<compile_context>
chip_gen: v7x
topology: tpu7x:2x2x1
jax: 0.10.0
libtpu: 0.0.40
codegen_flags: <defaults>
</compile_context>

<pallas_src>
import jax
import jax.numpy as jnp
from jax.experimental import pallas as pl
from jax.experimental.pallas import tpu as pltpu

_LANE = 128                 # vreg lane width
_SUB = 8                    # vreg sublane count (f32)
_TARGET_BLOCK_ROWS = 8192   # (8192, 128) f32 block = 4 MiB per buffer


# --------------------------------------------------------------------------
# Kernels
# --------------------------------------------------------------------------
def _toy2_kernel(a_ref, x_ref, o_ref):
    """2x2 system on the interleaved-lane layout.

    x_ref is the row-major flattening of y (B, 2) viewed as (rt, 128): even
    lanes carry y[b, 0], odd lanes carry y[b, 1].  Rolls use the XLU slot,
    the blend is pure VPU, A is read as SMEM scalars -- no MXU, no transpose.
    Roll wrap-around only lands on lanes of the opposite parity, so it is
    always masked out by the jnp.where.
    """
    x = x_ref[...].astype(jnp.float32)                    # (rt, 128)
    x_next = pltpu.roll(x, shift=_LANE - 1, axis=1)       # x[k+1] at lane k
    x_prev = pltpu.roll(x, shift=1, axis=1)               # x[k-1] at lane k
    a00 = a_ref[0, 0]
    a01 = a_ref[0, 1]
    a10 = a_ref[1, 0]
    a11 = a_ref[1, 1]
    out_even = a00 * x + a10 * x_next                     # dydt[b, 0] (even lanes)
    out_odd = a01 * x_prev + a11 * x                      # dydt[b, 1] (odd lanes)
    lane = jax.lax.broadcasted_iota(jnp.int32, x.shape, 1)
    o_ref[...] = jnp.where((lane & 1) == 0, out_even, out_odd).astype(o_ref.dtype)


def _mxu_kernel(a_ref, y_ref, o_ref):
    """General path for larger systems: (tb, D_in) @ (D_in, D_out) on the MXU."""
    o_ref[...] = jnp.dot(
        y_ref[...].astype(jnp.float32),
        a_ref[...].astype(jnp.float32),
        preferred_element_type=jnp.float32,
    ).astype(o_ref.dtype)


# --------------------------------------------------------------------------
# Tiling helpers
# --------------------------------------------------------------------------
def _plan_rows(n_rows, vmem_limit_bytes):
    """Pick (row_tile, padded_rows, grid_steps) for (rows, 128) f32 blocks.

    Padding-aware budget: one double-buffered input block + one double-
    buffered output block, each rt*128*4 bytes, kept under ~half the scoped
    VMEM limit.  Blocks target ~4 MiB (well past the ~0.35us/step overhead
    knee) and there is no forced multi-step split for small batches.
    """
    budget = vmem_limit_bytes // 2
    cap = budget // (2 * 2 * _LANE * 4)                 # (in + out) x double-buffer
    cap = max(_SUB, min(_TARGET_BLOCK_ROWS, (cap // _SUB) * _SUB))
    steps = pl.cdiv(n_rows, cap)
    rt = _SUB * pl.cdiv(pl.cdiv(n_rows, steps), _SUB)   # balanced, sublane-aligned
    return rt, rt * steps, steps


# --------------------------------------------------------------------------
# Forward paths
# --------------------------------------------------------------------------
def _toy2_forward(y, true_A, row_tile, vmem_limit_bytes):
    B, _ = y.shape
    n = y.size                                          # B * 2 (row-major flat)
    n_rows = pl.cdiv(n, _LANE)
    if row_tile is None:
        rt, n_rows_pad, steps = _plan_rows(n_rows, vmem_limit_bytes)
    else:
        rt = _SUB * pl.cdiv(int(row_tile), _SUB)
        steps = pl.cdiv(n_rows, rt)
        n_rows_pad = rt * steps
    n_pad = n_rows_pad * _LANE

    # (B, 2) -> flat -> (rows, 128): layout-preserving reshape, no HBM copy.
    x = y.reshape(-1)
    if n_pad != n:
        # Resource guard (keeps tiles regular on v7x's 64 MiB VMEM).
        # TODO(synk): a masked remainder tile would avoid this one-time pad copy.
        x = jnp.pad(x, (0, n_pad - n))
    x = x.reshape(n_rows_pad, _LANE)

    cost = pl.CostEstimate(
        flops=4 * n,
        transcendentals=0,
        bytes_accessed=2 * n * y.dtype.itemsize + true_A.size * 4,
    )

    out = pl.pallas_call(
        _toy2_kernel,
        out_shape=jax.ShapeDtypeStruct((n_rows_pad, _LANE), y.dtype),
        grid_spec=pltpu.PrefetchScalarGridSpec(
            num_scalar_prefetch=0,
            grid=(steps,),
            in_specs=[
                # Tiny A: resident in SMEM, read as scalars (no VMEM pipeline).
                pl.BlockSpec(memory_space=pltpu.MemorySpace.SMEM),
                # Flat state: lane- and sublane-dense (rt, 128) blocks.
                pl.BlockSpec((rt, _LANE), lambda i: (i, 0)),
            ],
            out_specs=pl.BlockSpec((rt, _LANE), lambda i: (i, 0)),
        ),
        compiler_params=pltpu.CompilerParams(
            dimension_semantics=("parallel",),
            vmem_limit_bytes=vmem_limit_bytes,
        ),
        cost_estimate=cost,
    )(true_A.astype(jnp.float32), x)

    out = out.reshape(-1)
    if n_pad != n:
        out = out[:n]
    return out.reshape(B, 2)


def _mxu_forward(y, true_A, batch_tile, vmem_limit_bytes):
    B, D_in = y.shape
    _, D_out = true_A.shape

    if B % _SUB != 0:
        # TODO(synk): masked remainder tile for ragged batches on the MXU path.
        return jnp.einsum("bi,ij->bj", y, true_A)

    if batch_tile is None:
        budget = vmem_limit_bytes // 2
        cap = budget // (2 * (D_in + D_out) * 4)        # f32 in-kernel, double-buffered
        batch_tile = max(_SUB, min(65536, (cap // _SUB) * _SUB))
    tb = min(B, max(_SUB, _SUB * (int(batch_tile) // _SUB)))
    while B % tb:
        tb -= _SUB

    out = pl.pallas_call(
        _mxu_kernel,
        out_shape=jax.ShapeDtypeStruct((B, D_out), y.dtype),
        grid_spec=pltpu.PrefetchScalarGridSpec(
            num_scalar_prefetch=0,
            grid=(B // tb,),
            in_specs=[
                pl.BlockSpec((D_in, D_out), lambda i: (0, 0)),   # A resident in VMEM
                pl.BlockSpec((tb, D_in), lambda i: (i, 0)),
            ],
            out_specs=pl.BlockSpec((tb, D_out), lambda i: (i, 0)),
        ),
        compiler_params=pltpu.CompilerParams(
            dimension_semantics=("parallel",),
            vmem_limit_bytes=vmem_limit_bytes,
        ),
        cost_estimate=pl.CostEstimate(
            flops=2 * B * D_in * D_out,
            transcendentals=0,
            bytes_accessed=(B * D_in + B * D_out + D_in * D_out) * y.dtype.itemsize,
        ),
    )(true_A, y)
    return out


# --------------------------------------------------------------------------
# Public wrapper (== TrueODEFunc.forward)
# --------------------------------------------------------------------------
def true_ode_func(t, y, true_A, *, use_pallas=None, row_tile=None,
                  batch_tile=None, vmem_limit_bytes=32 * 1024 * 1024):
    """Pallas equivalent of TrueODEFunc.forward(t, y): dydt = y @ true_A.

    t is unused (kept for API parity with the torch module).
    y: (B, D_in), true_A: (D_in, D_out) -> (B, D_out).
    """
    del t  # unused, exactly like the PyTorch module
    B, D_in = y.shape
    D_in2, D_out = true_A.shape
    assert D_in == D_in2

    if use_pallas is None:
        # Below ~1 MiB of traffic the fused XLA einsum (which folds into the
        # surrounding ODE-integrator step) beats pallas_call launch overhead.
        use_pallas = y.size >= 256 * 1024
    if not use_pallas:
        return jnp.einsum("bi,ij->bj", y, true_A)

    if D_in == 2 and D_out == 2:
        return _toy2_forward(y, true_A, row_tile, vmem_limit_bytes)
    return _mxu_forward(y, true_A, batch_tile, vmem_limit_bytes)


# --------------------------------------------------------------------------
if __name__ == "__main__":
    key = jax.random.PRNGKey(0)
    k1, k2, k3, k4 = jax.random.split(key, 4)

    # Canonical toy-ODE system matrix.
    true_A = jnp.array([[-0.1, 2.0], [-2.0, -0.1]], dtype=jnp.float32)
    t = jnp.float32(0.0)  # unused by the function, present for API parity

    def ref(y, A):
        return jnp.einsum("bi,ij->bj", y, A)

    # 1) Interleaved-lane Pallas kernel (auto-dispatch), multi-step pipelined
    #    grid exercised via a small explicit row tile (4 blocks of (512, 128)).
    B1 = 131072
    y1 = jax.random.normal(k1, (B1, 2), dtype=jnp.float32)
    out1 = jax.block_until_ready(true_ode_func(t, y1, true_A, row_tile=512))
    assert out1.shape == (B1, 2)
    assert jnp.allclose(out1, ref(y1, true_A), atol=1e-5, rtol=1e-5)

    # 2) Ragged batch: exercises the zero-pad remainder guard (forced Pallas).
    y2 = jax.random.normal(k2, (1000, 2), dtype=jnp.float32)
    out2 = jax.block_until_ready(true_ode_func(t, y2, true_A, use_pallas=True))
    assert out2.shape == (1000, 2)
    assert jnp.allclose(out2, ref(y2, true_A), atol=1e-5, rtol=1e-5)

    # 3) Larger system: MXU dispatch path (guards reuse beyond the 2x2 toy).
    A16 = 0.1 * jax.random.normal(k3, (16, 16), dtype=jnp.float32)
    y3 = jax.random.normal(k4, (1024, 16), dtype=jnp.float32)
    out3 = jax.block_until_ready(true_ode_func(t, y3, A16, use_pallas=True))
    assert out3.shape == (1024, 16)
    assert jnp.allclose(out3, ref(y3, A16), atol=1e-4, rtol=1e-4)

    # 4) Literal toy size: fused einsum fallback (pallas_call launch overhead
    #    would dominate inside an ODE-integrator loop).
    y4 = jax.random.normal(k1, (8, 2), dtype=jnp.float32)
    out4 = jax.block_until_ready(true_ode_func(t, y4, true_A))
    assert jnp.allclose(out4, ref(y4, true_A), atol=1e-6, rtol=1e-6)

    print("KERNEL_OK")
</pallas_src>

<mosaic_0001>
module attributes {stable_mosaic.version = 11 : i64} {
  func.func @_toy2_kernel(%arg0: i32, %arg1: memref<2x2xf32, #tpu.memory_space<smem>>, %arg2: memref<512x128xf32, #tpu.memory_space<vmem>>, %arg3: memref<512x128xf32, #tpu.memory_space<vmem>>) attributes {dimension_semantics = [#tpu.dimension_semantics<parallel>], iteration_bounds = array<i64: 4>, scalar_prefetch = 0 : i64, scratch_operands = 0 : i64, tpu.core_type = #tpu.core_type<tc>, window_params = [{transform_indices = @transform_0, window_bounds = array<i64: 2, 2>}, {transform_indices = @transform_1, window_bounds = array<i64: 512, 128>}, {transform_indices = @transform_2, window_bounds = array<i64: 512, 128>}]} {
    %c0 = arith.constant 0 : index
    %c0_0 = arith.constant 0 : index
    %0 = vector.load %arg2[%c0, %c0_0] : memref<512x128xf32, #tpu.memory_space<vmem>>, vector<512x128xf32>
    %c127_i32 = arith.constant 127 : i32
    %1 = tpu.dynamic_rotate %0 by %c127_i32 dim 1 : vector<512x128xf32>, i32 -> vector<512x128xf32>
    %c1_i32 = arith.constant 1 : i32
    %2 = tpu.dynamic_rotate %0 by %c1_i32 dim 1 : vector<512x128xf32>, i32 -> vector<512x128xf32>
    %c0_1 = arith.constant 0 : index
    %c0_2 = arith.constant 0 : index
    %3 = memref.load %arg1[%c0_1, %c0_2] : memref<2x2xf32, #tpu.memory_space<smem>>
    %c0_3 = arith.constant 0 : index
    %c1 = arith.constant 1 : index
    %4 = memref.load %arg1[%c0_3, %c1] : memref<2x2xf32, #tpu.memory_space<smem>>
    %c1_4 = arith.constant 1 : index
    %c0_5 = arith.constant 0 : index
    %5 = memref.load %arg1[%c1_4, %c0_5] : memref<2x2xf32, #tpu.memory_space<smem>>
    %c1_6 = arith.constant 1 : index
    %c1_7 = arith.constant 1 : index
    %6 = memref.load %arg1[%c1_6, %c1_7] : memref<2x2xf32, #tpu.memory_space<smem>>
    %7 = vector.broadcast %3 : f32 to vector<512x128xf32>
    %8 = arith.mulf %7, %0 : vector<512x128xf32>
    %9 = vector.broadcast %5 : f32 to vector<512x128xf32>
    %10 = arith.mulf %9, %1 : vector<512x128xf32>
    %11 = arith.addf %8, %10 : vector<512x128xf32>
    %12 = vector.broadcast %4 : f32 to vector<512x128xf32>
    %13 = arith.mulf %12, %2 : vector<512x128xf32>
    %14 = vector.broadcast %6 : f32 to vector<512x128xf32>
    %15 = arith.mulf %14, %0 : vector<512x128xf32>
    %16 = arith.addf %13, %15 : vector<512x128xf32>
    %17 = tpu.iota {dimensions = array<i32: 1>} : vector<512x128xi32>
    %c1_i32_8 = arith.constant 1 : i32
    %18 = vector.broadcast %c1_i32_8 : i32 to vector<512x128xi32>
    %19 = arith.andi %17, %18 : vector<512x128xi32>
    %c0_i32 = arith.constant 0 : i32
    %20 = vector.broadcast %c0_i32 : i32 to vector<512x128xi32>
    %21 = arith.cmpi eq, %19, %20 : vector<512x128xi32>
    %22 = arith.select %21, %11, %16 : vector<512x128xi1>, vector<512x128xf32>
    %c0_9 = arith.constant 0 : index
    %c0_10 = arith.constant 0 : index
    %23 = vector.load %arg3[%c0_9, %c0_10] : memref<512x128xf32, #tpu.memory_space<vmem>>, vector<512x128xf32>
    tpu.vector_store %arg3[%c0_9, %c0_10], %22 {strides = array<i32>} : memref<512x128xf32, #tpu.memory_space<vmem>>, vector<512x128xf32>,
    return
  }
  func.func @transform_0(%arg0: i32) -> (i32, i32) {
    %c0_i32 = arith.constant 0 : i32
    %c0_i32_0 = arith.constant 0 : i32
    %c0_i32_1 = arith.constant 0 : i32
    return %c0_i32, %c0_i32_0 : i32, i32
  }
  func.func @transform_1(%arg0: i32) -> (i32, i32) {
    %c0_i32 = arith.constant 0 : i32
    %c0_i32_0 = arith.constant 0 : i32
    return %arg0, %c0_i32 : i32, i32
  }
  func.func @transform_2(%arg0: i32) -> (i32, i32) {
    %c0_i32 = arith.constant 0 : i32
    %c0_i32_0 = arith.constant 0 : i32
    return %arg0, %c0_i32 : i32, i32
  }
}

</mosaic_0001>

<llo_original>
// kernel: tpu_custom_call.1
$region0: #{tpu_custom_call.1}
  #allocation0 [shape = 'u32[]', space=smem, size = 0x4, offset = 0x4, fixed_abs, tag = 'smem constant byte address 0x4 - core index']
  #allocation1 [shape = 'u32[144,128]{1,0:T(1,128)}', space=vmem, size = 0x12000, scoped, tag = 'internal scratch']
  %s0 = inlined_call_operand.hbm [shape: f32[2,2], index: 0, kind: input, shape index: {}]
  %s1 = inlined_call_operand.hbm [shape: f32[2048,128], index: 1, kind: input, shape index: {}]
  %s2 = inlined_call_operand.hbm [shape: f32[2048,128], index: 2, kind: output, shape index: {}]
  %s3 = sld [smem:[#allocation0]]
  $region49: #{tpu_custom_call.1} parent=0
    _
  %s5 = ssub.s32 1, %s3
  %s6 = scalar_select 0, %s5, %s3
  $region1: #{tpu_custom_call.1} parent=0
    #allocation2 [shape = 'u8[1024]{0}', space=smem, size = 0x400, scoped, tag = 'input window, operand 0, single buffered']
    #allocation3 [shape = 's32[2]{0}', space=sflag, size = 0x8, scoped, tag = 'scoped memory for tpu_custom_call.1']
    #allocation4 [shape = 's32[2]{0}', space=sflag, size = 0x8, scoped, tag = 'scoped memory for tpu_custom_call.1']
    #allocation5 [shape = 's32[2]{0}', space=sflag, size = 0x8, scoped, tag = 'scoped memory for tpu_custom_call.1']
    #allocation6 [shape = 'u8[524288]{0}', space=vmem, size = 0x80000, scoped, tag = 'input window, operand 1']
    #allocation7 [shape = 'u8[524288]{0}', space=vmem, size = 0x80000, scoped, tag = 'output window, operand 0']
    %7 = vsyncpa [#allocation5], 0
    %8 = vsyncpa [#allocation3], 0
    %s9 = scalar_lea.sflag [#allocation3], 1
    %10 = vsyncpa %s9, 0
    %11 = vsyncpa [#allocation4], 0
    %s12 = scalar_lea.sflag [#allocation4], 1
    %13 = vsyncpa %s12, 0
    loop: start=0, step=1, limit=6
    $region2: #{tpu_custom_call.1} parent=1 // loop_pre_header
      _
    $region3: #{tpu_custom_call.1} parent=1 // loop_header
      %s15 = sphi 0, %s19
      %p16 = scmp.ge.s32.totalorder %s15, 6
      %s23 = sphi 0, %s23
      %s25 = sphi 0, %s23
      %s26 = sphi 0, %s25
      %s40 = sphi 0, %s26
      %s46 = sphi 0, %s48
      %s49 = sphi 0, %s46
      %s50 = sphi 0, %s49
      %s66 = sphi 0, %s50
      %s72 = sphi 0, %s74
      %s75 = sphi 0, %s72
      %s76 = sphi 0, %s75
      %s92 = sphi 0, %s76
    $region4: #{tpu_custom_call.1} parent=1 // loop_header_branch
      %18 = sbr.rel (%p16) target = $region8
    $region5: #{tpu_custom_call.1} parent=1 // loop_body
      %s20 = ssub.s32 %s15, 1
      %s21 = ssub.s32 %s15, 2
      %s22 = sadd.s32 %s15, 1
      %s24 = sadd.s32 %s23, 1
      %p27 = scmp.eq.s32.totalorder %s15, 3
      %p28 = scmp.ne.s32.totalorder %s23, %s25
      %p29 = scmp.eq.s32.totalorder %s15, 0
      %p30 = por %p28, %p29
      %p31 = scmp.ne.s32.totalorder %s23, %s25
      %p32 = scmp.eq.s32.totalorder %s20, 3
      %p33 = por %p31, %p32
      %p34 = scmp.ne.s32.totalorder %s25, %s26
      %p35 = scmp.eq.s32.totalorder %s20, 0
      %p36 = por %p34, %p35
      %p37 = scmp.ne.s32.totalorder %s25, %s26
      %p38 = scmp.eq.s32.totalorder %s21, 3
      %p39 = por %p37, %p38
      %p41 = scmp.ne.s32.totalorder %s26, %s40
      %p42 = scmp.eq.s32.totalorder %s21, 0
      %p43 = por %p41, %p42
      %s44 = ssub.s32 %s15, %s22
      %p45 = scmp.eq.s32.totalorder %s44, 0
      %s47 = sadd.s32 %s46, 1
      %s48 = scalar_select %p45, %s46, %s47
      %p51 = pneg %p45
      %p52 = scmp.eq.s32.totalorder %s15, 3
      %p53 = por %p51, %p52
      %p54 = scmp.ne.s32.totalorder %s46, %s49
      %p55 = scmp.eq.s32.totalorder %s15, 0
      %p56 = por %p54, %p55
      %p57 = scmp.ne.s32.totalorder %s46, %s49
      %p58 = scmp.eq.s32.totalorder %s20, 3
      %p59 = por %p57, %p58
      %p60 = scmp.ne.s32.totalorder %s49, %s50
      %p61 = scmp.eq.s32.totalorder %s20, 0
      %p62 = por %p60, %p61
      %p63 = scmp.ne.s32.totalorder %s49, %s50
      %p64 = scmp.eq.s32.totalorder %s21, 3
      %p65 = por %p63, %p64
      %p67 = scmp.ne.s32.totalorder %s50, %s66
      %p68 = scmp.eq.s32.totalorder %s21, 0
      %p69 = por %p67, %p68
      %s70 = ssub.s32 %s15, %s22
      %p71 = scmp.eq.s32.totalorder %s70, 0
      %s73 = sadd.s32 %s72, 1
      %s74 = scalar_select %p71, %s72, %s73
      %p77 = pneg %p71
      %p78 = scmp.eq.s32.totalorder %s15, 3
      %p79 = por %p77, %p78
      %p80 = scmp.ne.s32.totalorder %s72, %s75
      %p81 = scmp.eq.s32.totalorder %s15, 0
      %p82 = por %p80, %p81
      %p83 = scmp.ne.s32.totalorder %s72, %s75
      %p84 = scmp.eq.s32.totalorder %s20, 3
      %p85 = por %p83, %p84
      %p86 = scmp.ne.s32.totalorder %s75, %s76
      %p87 = scmp.eq.s32.totalorder %s20, 0
      %p88 = por %p86, %p87
      %p89 = scmp.ne.s32.totalorder %s75, %s76
      %p90 = scmp.eq.s32.totalorder %s21, 3
      %p91 = por %p89, %p90
      %p93 = scmp.ne.s32.totalorder %s76, %s92
      %p94 = scmp.eq.s32.totalorder %s21, 0
      %p95 = por %p93, %p94
      %p96 = scmp.le.s32.totalorder 1, %s15
      %p97 = scmp.lt.s32.totalorder %s15, 5
      %p98 = pnand %p96, %p97
      %p99 = pneg %p98
      // Predicated region
      $region9: #{tpu_custom_call.1} parent=5 // pred_check
        _
      $region10: #{tpu_custom_call.1} parent=5 // pred_check_branch
        %101 = sbr.rel (%p98) target = $region12
      $region11: #{tpu_custom_call.1} parent=5 // pred_region
        %s102 = ssub.s32 %s15, 1
        // Predicated region
        $region13: #{tpu_custom_call.1} parent=11 // pred_check
          %p103 = pneg %p36
        $region14: #{tpu_custom_call.1} parent=11 // pred_check_branch
          %105 = sbr.rel (%p103) target = $region16
        $region15: #{tpu_custom_call.1} parent=11 // pred_region
          %s107 = ssub.s32 32, 32
          %108 = vsyncadd [#allocation5], %s107
          %111 = dma.hbm_to_smem %s0, 32, [#allocation2], [#allocation5]
        $region16: #{tpu_custom_call.1} parent=11 // pred_fallthru
          _
      $region12: #{tpu_custom_call.1} parent=5 // pred_fallthru
        _
      %p112 = scmp.lt.s32.totalorder %s15, 4
      // Predicated region
      $region17: #{tpu_custom_call.1} parent=5 // pred_check
        %p113 = pneg %p112
      $region18: #{tpu_custom_call.1} parent=5 // pred_check_branch
        %115 = sbr.rel (%p113) target = $region20
      $region19: #{tpu_custom_call.1} parent=5 // pred_region
        // Predicated region
        $region21: #{tpu_custom_call.1} parent=19 // pred_check
          %p116 = pneg %p56
        $region22: #{tpu_custom_call.1} parent=19 // pred_check_branch
          %118 = sbr.rel (%p116) target = $region24
        $region23: #{tpu_custom_call.1} parent=19 // pred_region
          %s119 = sand.u32 %s46, 1
          %s120 = scalar_lea.sflag [#allocation3], %s119
          %s121 = sand.u32 %s46, 1
          %s122 = smul.addr %s121, 512
          %s123 = scalar_lea.vmem [#allocation6], %s122
          %s124 = smul.u32 64, %s15
          %s126 = ssub.s32 8192, 8192
          %127 = vsyncadd %s120, %s126
          %s128 = smul.addr %s124, 128
          %s129 = scalar_lea.hbm %s1, %s128
          %s130 = sshll.u32 %s123, 4
          %s131 = int_to_ptr.vmem [resolvable:$true] %s130
          %136 = dma.hbm_to_vmem [thread:$0]  %s129, 8192, %s131, %s120, 128, 128, 8
        $region24: #{tpu_custom_call.1} parent=19 // pred_fallthru
          _
      $region20: #{tpu_custom_call.1} parent=5 // pred_fallthru
        _
      %p137 = scmp.le.s32.totalorder 1, %s15
      %p138 = scmp.lt.s32.totalorder %s15, 5
      %p139 = pnand %p137, %p138
      %p140 = pneg %p139
      // Predicated region
      $region25: #{tpu_custom_call.1} parent=5 // pred_check
        _
      $region26: #{tpu_custom_call.1} parent=5 // pred_check_branch
        %142 = sbr.rel (%p139) target = $region28
      $region27: #{tpu_custom_call.1} parent=5 // pred_region
        %s143 = ssub.s32 %s15, 1
        // Predicated region
        $region29: #{tpu_custom_call.1} parent=27 // pred_check
          %p144 = pneg %p36
        $region30: #{tpu_custom_call.1} parent=27 // pred_check_branch
          %146 = sbr.rel (%p144) target = $region32
        $region31: #{tpu_custom_call.1} parent=27 // pred_region
          %147 = dma.done [#allocation5], 32
        $region32: #{tpu_custom_call.1} parent=27 // pred_fallthru
          _
        %s148 = sand.u32 %s49, 1
        %s149 = scalar_lea.sflag [#allocation3], %s148
        %s150 = sand.u32 %s49, 1
        %s151 = smul.addr %s150, 512
        %s152 = scalar_lea.vmem [#allocation6], %s151
        // Predicated region
        $region33: #{tpu_custom_call.1} parent=27 // pred_check
          %p153 = pneg %p62
        $region34: #{tpu_custom_call.1} parent=27 // pred_check_branch
          %155 = sbr.rel (%p153) target = $region36
        $region35: #{tpu_custom_call.1} parent=27 // pred_region
          %156 = dma.done %s149, 8192
        $region36: #{tpu_custom_call.1} parent=27 // pred_fallthru
          _
        %157 = sfence
        %p158 = pneg %p36
        %p159 = pneg %p33
        %s160 = sand.u32 %s49, 1
        %s161 = scalar_lea.sflag [#allocation3], %s160
        %s162 = sand.u32 %s49, 1
        %s163 = smul.addr %s162, 512
        %s164 = scalar_lea.vmem [#allocation6], %s163
        %p165 = pneg %p62
        %p166 = pneg %p59
        %p167 = pneg %p88
        %p168 = pneg %p85
        %s169 = sand.u32 %s75, 1
        %s170 = scalar_lea.sflag [#allocation4], %s169
        %s171 = sand.u32 %s75, 1
        %s172 = smul.addr %s171, 512
        %s173 = scalar_lea.vmem [#allocation7], %s172
        %s174 = smul.u32 64, %s20
        %s175 = smul.u32 64, %s20
        %v176 = vld [vmem:[%s152] sm:$0xff]
        %v177 = vld [vmem:[%s152 + $0x8] sm:$0xff]
        %v178 = vld [vmem:[%s152 + $0x10] sm:$0xff]
        %v179 = vld [vmem:[%s152 + $0x18] sm:$0xff]
        %v180 = vld [vmem:[%s152 + $0x20] sm:$0xff]
        %v181 = vld [vmem:[%s152 + $0x28] sm:$0xff]
        %v182 = vld [vmem:[%s152 + $0x30] sm:$0xff]
        %v183 = vld [vmem:[%s152 + $0x38] sm:$0xff]
        %v184 = vld [vmem:[%s152 + $0x40] sm:$0xff]
        %v185 = vld [vmem:[%s152 + $0x48] sm:$0xff]
        %v186 = vld [vmem:[%s152 + $0x50] sm:$0xff]
        %v187 = vld [vmem:[%s152 + $0x58] sm:$0xff]
        %v188 = vld [vmem:[%s152 + $0x60] sm:$0xff]
        %v189 = vld [vmem:[%s152 + $0x68] sm:$0xff]
        %v190 = vld [vmem:[%s152 + $0x70] sm:$0xff]
        %v191 = vld [vmem:[%s152 + $0x78] sm:$0xff]
        %v192 = vld [vmem:[%s152 + $0x80] sm:$0xff]
        %v193 = vld [vmem:[%s152 + $0x88] sm:$0xff]
        %v194 = vld [vmem:[%s152 + $0x90] sm:$0xff]
        %v195 = vld [vmem:[%s152 + $0x98] sm:$0xff]
        %v196 = vld [vmem:[%s152 + $0xa0] sm:$0xff]
        %v197 = vld [vmem:[%s152 + $0xa8] sm:$0xff]
        %v198 = vld [vmem:[%s152 + $0xb0] sm:$0xff]
        %v199 = vld [vmem:[%s152 + $0xb8] sm:$0xff]
        %v200 = vld [vmem:[%s152 + $0xc0] sm:$0xff]
        %v201 = vld [vmem:[%s152 + $0xc8] sm:$0xff]
        %v202 = vld [vmem:[%s152 + $0xd0] sm:$0xff]
        %v203 = vld [vmem:[%s152 + $0xd8] sm:$0xff]
        %v204 = vld [vmem:[%s152 + $0xe0] sm:$0xff]
        %v205 = vld [vmem:[%s152 + $0xe8] sm:$0xff]
        %v206 = vld [vmem:[%s152 + $0xf0] sm:$0xff]
        %v207 = vld [vmem:[%s152 + $0xf8] sm:$0xff]
        %v208 = vld [vmem:[%s152 + $0x100] sm:$0xff]
        %v209 = vld [vmem:[%s152 + $0x108] sm:$0xff]
        %v210 = vld [vmem:[%s152 + $0x110] sm:$0xff]
        %v211 = vld [vmem:[%s152 + $0x118] sm:$0xff]
        %v212 = vld [vmem:[%s152 + $0x120] sm:$0xff]
        %v213 = vld [vmem:[%s152 + $0x128] sm:$0xff]
        %v214 = vld [vmem:[%s152 + $0x130] sm:$0xff]
        %v215 = vld [vmem:[%s152 + $0x138] sm:$0xff]
        %v216 = vld [vmem:[%s152 + $0x140] sm:$0xff]
        %v217 = vld [vmem:[%s152 + $0x148] sm:$0xff]
        %v218 = vld [vmem:[%s152 + $0x150] sm:$0xff]
        %v219 = vld [vmem:[%s152 + $0x158] sm:$0xff]
        %v220 = vld [vmem:[%s152 + $0x160] sm:$0xff]
        %v221 = vld [vmem:[%s152 + $0x168] sm:$0xff]
        %v222 = vld [vmem:[%s152 + $0x170] sm:$0xff]
        %v223 = vld [vmem:[%s152 + $0x178] sm:$0xff]
        %v224 = vld [vmem:[%s152 + $0x180] sm:$0xff]
        %v225 = vld [vmem:[%s152 + $0x188] sm:$0xff]
        %v226 = vld [vmem:[%s152 + $0x190] sm:$0xff]
        %v227 = vld [vmem:[%s152 + $0x198] sm:$0xff]
        %v228 = vld [vmem:[%s152 + $0x1a0] sm:$0xff]
        %v229 = vld [vmem:[%s152 + $0x1a8] sm:$0xff]
        %v230 = vld [vmem:[%s152 + $0x1b0] sm:$0xff]
        %v231 = vld [vmem:[%s152 + $0x1b8] sm:$0xff]
        %v232 = vld [vmem:[%s152 + $0x1c0] sm:$0xff]
        %v233 = vld [vmem:[%s152 + $0x1c8] sm:$0xff]
        %v234 = vld [vmem:[%s152 + $0x1d0] sm:$0xff]
        %v235 = vld [vmem:[%s152 + $0x1d8] sm:$0xff]
        %v236 = vld [vmem:[%s152 + $0x1e0] sm:$0xff]
        %v237 = vld [vmem:[%s152 + $0x1e8] sm:$0xff]
        %v238 = vld [vmem:[%s152 + $0x1f0] sm:$0xff]
        %v239 = vld [vmem:[%s152 + $0x1f8] sm:$0xff]
        %240 = vrot.lane.b32.xlu0 %v176, 127
        %v241 = vpop.permute.xlu0 %240
        %242 = vrot.lane.b32.xlu0 %v177, 127
        %v243 = vpop.permute.xlu0 %242
        %244 = vrot.lane.b32.xlu0 %v178, 127
        %v245 = vpop.permute.xlu0 %244
        %246 = vrot.lane.b32.xlu0 %v179, 127
        %v247 = vpop.permute.xlu0 %246
        %248 = vrot.lane.b32.xlu0 %v180, 127
        %v249 = vpop.permute.xlu0 %248
        %250 = vrot.lane.b32.xlu0 %v181, 127
        %v251 = vpop.permute.xlu0 %250
        %252 = vrot.lane.b32.xlu0 %v182, 127
        %v253 = vpop.permute.xlu0 %252
        %254 = vrot.lane.b32.xlu0 %v183, 127
        %v255 = vpop.permute.xlu0 %254
        %256 = vrot.lane.b32.xlu0 %v184, 127
        %v257 = vpop.permute.xlu0 %256
        %258 = vrot.lane.b32.xlu0 %v185, 127
        %v259 = vpop.permute.xlu0 %258
        %260 = vrot.lane.b32.xlu0 %v186, 127
        %v261 = vpop.permute.xlu0 %260
        %262 = vrot.lane.b32.xlu0 %v187, 127
        %v263 = vpop.permute.xlu0 %262
        %264 = vrot.lane.b32.xlu0 %v188, 127
        %v265 = vpop.permute.xlu0 %264
        %266 = vrot.lane.b32.xlu0 %v189, 127
        %v267 = vpop.permute.xlu0 %266
        %268 = vrot.lane.b32.xlu0 %v190, 127
        %v269 = vpop.permute.xlu0 %268
        %270 = vrot.lane.b32.xlu0 %v191, 127
        %v271 = vpop.permute.xlu0 %270
        %272 = vrot.lane.b32.xlu0 %v192, 127
        %v273 = vpop.permute.xlu0 %272
        %274 = vrot.lane.b32.xlu0 %v193, 127
        %v275 = vpop.permute.xlu0 %274
        %276 = vrot.lane.b32.xlu0 %v194, 127
        %v277 = vpop.permute.xlu0 %276
        %278 = vrot.lane.b32.xlu0 %v195, 127
        %v279 = vpop.permute.xlu0 %278
        %280 = vrot.lane.b32.xlu0 %v196, 127
        %v281 = vpop.permute.xlu0 %280
        %282 = vrot.lane.b32.xlu0 %v197, 127
        %v283 = vpop.permute.xlu0 %282
        %284 = vrot.lane.b32.xlu0 %v198, 127
        %v285 = vpop.permute.xlu0 %284
        %286 = vrot.lane.b32.xlu0 %v199, 127
        %v287 = vpop.permute.xlu0 %286
        %288 = vrot.lane.b32.xlu0 %v200, 127
        %v289 = vpop.permute.xlu0 %288
        %290 = vrot.lane.b32.xlu0 %v201, 127
        %v291 = vpop.permute.xlu0 %290
        %292 = vrot.lane.b32.xlu0 %v202, 127
        %v293 = vpop.permute.xlu0 %292
        %294 = vrot.lane.b32.xlu0 %v203, 127
        %v295 = vpop.permute.xlu0 %294
        %296 = vrot.lane.b32.xlu0 %v204, 127
        %v297 = vpop.permute.xlu0 %296
        %298 = vrot.lane.b32.xlu0 %v205, 127
        %v299 = vpop.permute.xlu0 %298
        %300 = vrot.lane.b32.xlu0 %v206, 127
        %v301 = vpop.permute.xlu0 %300
        %302 = vrot.lane.b32.xlu0 %v207, 127
        %v303 = vpop.permute.xlu0 %302
        %304 = vrot.lane.b32.xlu0 %v208, 127
        %v305 = vpop.permute.xlu0 %304
        %306 = vrot.lane.b32.xlu0 %v209, 127
        %v307 = vpop.permute.xlu0 %306
        %308 = vrot.lane.b32.xlu0 %v210, 127
        %v309 = vpop.permute.xlu0 %308
        %310 = vrot.lane.b32.xlu0 %v211, 127
        %v311 = vpop.permute.xlu0 %310
        %312 = vrot.lane.b32.xlu0 %v212, 127
        %v313 = vpop.permute.xlu0 %312
        %314 = vrot.lane.b32.xlu0 %v213, 127
        %v315 = vpop.permute.xlu0 %314
        %316 = vrot.lane.b32.xlu0 %v214, 127
        %v317 = vpop.permute.xlu0 %316
        %318 = vrot.lane.b32.xlu0 %v215, 127
        %v319 = vpop.permute.xlu0 %318
        %320 = vrot.lane.b32.xlu0 %v216, 127
        %v321 = vpop.permute.xlu0 %320
        %322 = vrot.lane.b32.xlu0 %v217, 127
        %v323 = vpop.permute.xlu0 %322
        %324 = vrot.lane.b32.xlu0 %v218, 127
        %v325 = vpop.permute.xlu0 %324
        %326 = vrot.lane.b32.xlu0 %v219, 127
        %v327 = vpop.permute.xlu0 %326
        %328 = vrot.lane.b32.xlu0 %v220, 127
        %v329 = vpop.permute.xlu0 %328
        %330 = vrot.lane.b32.xlu0 %v221, 127
        %v331 = vpop.permute.xlu0 %330
        %332 = vrot.lane.b32.xlu0 %v222, 127
        %v333 = vpop.permute.xlu0 %332
        %334 = vrot.lane.b32.xlu0 %v223, 127
        %v335 = vpop.permute.xlu0 %334
        %336 = vrot.lane.b32.xlu0 %v224, 127
        %v337 = vpop.permute.xlu0 %336
        %338 = vrot.lane.b32.xlu0 %v225, 127
        %v339 = vpop.permute.xlu0 %338
        %340 = vrot.lane.b32.xlu0 %v226, 127
        %v341 = vpop.permute.xlu0 %340
        %342 = vrot.lane.b32.xlu0 %v227, 127
        %v343 = vpop.permute.xlu0 %342
        %344 = vrot.lane.b32.xlu0 %v228, 127
        %v345 = vpop.permute.xlu0 %344
        %346 = vrot.lane.b32.xlu0 %v229, 127
        %v347 = vpop.permute.xlu0 %346
        %348 = vrot.lane.b32.xlu0 %v230, 127
        %v349 = vpop.permute.xlu0 %348
        %350 = vrot.lane.b32.xlu0 %v231, 127
        %v351 = vpop.permute.xlu0 %350
        %352 = vrot.lane.b32.xlu0 %v232, 127
        %v353 = vpop.permute.xlu0 %352
        %354 = vrot.lane.b32.xlu0 %v233, 127
        %v355 = vpop.permute.xlu0 %354
        %356 = vrot.lane.b32.xlu0 %v234, 127
        %v357 = vpop.permute.xlu0 %356
        %358 = vrot.lane.b32.xlu0 %v235, 127
        %v359 = vpop.permute.xlu0 %358
        %360 = vrot.lane.b32.xlu0 %v236, 127
        %v361 = vpop.permute.xlu0 %360
        %362 = vrot.lane.b32.xlu0 %v237, 127
        %v363 = vpop.permute.xlu0 %362
        %364 = vrot.lane.b32.xlu0 %v238, 127
        %v365 = vpop.permute.xlu0 %364
        %366 = vrot.lane.b32.xlu0 %v239, 127
        %v367 = vpop.permute.xlu0 %366
        %368 = vrot.lane.b32.xlu0 %v176, 1
        %v369 = vpop.permute.xlu0 %368
        %370 = vrot.lane.b32.xlu0 %v177, 1
        %v371 = vpop.permute.xlu0 %370
        %372 = vrot.lane.b32.xlu0 %v178, 1
        %v373 = vpop.permute.xlu0 %372
        %374 = vrot.lane.b32.xlu0 %v179, 1
        %v375 = vpop.permute.xlu0 %374
        %376 = vrot.lane.b32.xlu0 %v180, 1
        %v377 = vpop.permute.xlu0 %376
        %378 = vrot.lane.b32.xlu0 %v181, 1
        %v379 = vpop.permute.xlu0 %378
        %380 = vrot.lane.b32.xlu0 %v182, 1
        %v381 = vpop.permute.xlu0 %380
        %382 = vrot.lane.b32.xlu0 %v183, 1
        %v383 = vpop.permute.xlu0 %382
        %384 = vrot.lane.b32.xlu0 %v184, 1
        %v385 = vpop.permute.xlu0 %384
        %386 = vrot.lane.b32.xlu0 %v185, 1
        %v387 = vpop.permute.xlu0 %386
        %388 = vrot.lane.b32.xlu0 %v186, 1
        %v389 = vpop.permute.xlu0 %388
        %390 = vrot.lane.b32.xlu0 %v187, 1
        %v391 = vpop.permute.xlu0 %390
        %392 = vrot.lane.b32.xlu0 %v188, 1
        %v393 = vpop.permute.xlu0 %392
        %394 = vrot.lane.b32.xlu0 %v189, 1
        %v395 = vpop.permute.xlu0 %394
        %396 = vrot.lane.b32.xlu0 %v190, 1
        %v397 = vpop.permute.xlu0 %396
        %398 = vrot.lane.b32.xlu0 %v191, 1
        %v399 = vpop.permute.xlu0 %398
        %400 = vrot.lane.b32.xlu0 %v192, 1
        %v401 = vpop.permute.xlu0 %400
        %402 = vrot.lane.b32.xlu0 %v193, 1
        %v403 = vpop.permute.xlu0 %402
        %404 = vrot.lane.b32.xlu0 %v194, 1
        %v405 = vpop.permute.xlu0 %404
        %406 = vrot.lane.b32.xlu0 %v195, 1
        %v407 = vpop.permute.xlu0 %406
        %408 = vrot.lane.b32.xlu0 %v196, 1
        %v409 = vpop.permute.xlu0 %408
        %410 = vrot.lane.b32.xlu0 %v197, 1
        %v411 = vpop.permute.xlu0 %410
        %412 = vrot.lane.b32.xlu0 %v198, 1
        %v413 = vpop.permute.xlu0 %412
        %414 = vrot.lane.b32.xlu0 %v199, 1
        %v415 = vpop.permute.xlu0 %414
        %416 = vrot.lane.b32.xlu0 %v200, 1
        %v417 = vpop.permute.xlu0 %416
        %418 = vrot.lane.b32.xlu0 %v201, 1
        %v419 = vpop.permute.xlu0 %418
        %420 = vrot.lane.b32.xlu0 %v202, 1
        %v421 = vpop.permute.xlu0 %420
        %422 = vrot.lane.b32.xlu0 %v203, 1
        %v423 = vpop.permute.xlu0 %422
        %424 = vrot.lane.b32.xlu0 %v204, 1
        %v425 = vpop.permute.xlu0 %424
        %426 = vrot.lane.b32.xlu0 %v205, 1
        %v427 = vpop.permute.xlu0 %426
        %428 = vrot.lane.b32.xlu0 %v206, 1
        %v429 = vpop.permute.xlu0 %428
        %430 = vrot.lane.b32.xlu0 %v207, 1
        %v431 = vpop.permute.xlu0 %430
        %432 = vrot.lane.b32.xlu0 %v208, 1
        %v433 = vpop.permute.xlu0 %432
        %434 = vrot.lane.b32.xlu0 %v209, 1
        %v435 = vpop.permute.xlu0 %434
        %436 = vrot.lane.b32.xlu0 %v210, 1
        %v437 = vpop.permute.xlu0 %436
        %438 = vrot.lane.b32.xlu0 %v211, 1
        %v439 = vpop.permute.xlu0 %438
        %440 = vrot.lane.b32.xlu0 %v212, 1
        %v441 = vpop.permute.xlu0 %440
        %442 = vrot.lane.b32.xlu0 %v213, 1
        %v443 = vpop.permute.xlu0 %442
        %444 = vrot.lane.b32.xlu0 %v214, 1
        %v445 = vpop.permute.xlu0 %444
        %446 = vrot.lane.b32.xlu0 %v215, 1
        %v447 = vpop.permute.xlu0 %446
        %448 = vrot.lane.b32.xlu0 %v216, 1
        %v449 = vpop.permute.xlu0 %448
        %450 = vrot.lane.b32.xlu0 %v217, 1
        %v451 = vpop.permute.xlu0 %450
        %452 = vrot.lane.b32.xlu0 %v218, 1
        %v453 = vpop.permute.xlu0 %452
        %454 = vrot.lane.b32.xlu0 %v219, 1
        %v455 = vpop.permute.xlu0 %454
        %456 = vrot.lane.b32.xlu0 %v220, 1
        %v457 = vpop.permute.xlu0 %456
        %458 = vrot.lane.b32.xlu0 %v221, 1
        %v459 = vpop.permute.xlu0 %458
        %460 = vrot.lane.b32.xlu0 %v222, 1
        %v461 = vpop.permute.xlu0 %460
        %462 = vrot.lane.b32.xlu0 %v223, 1
        %v463 = vpop.permute.xlu0 %462
        %464 = vrot.lane.b32.xlu0 %v224, 1
        %v465 = vpop.permute.xlu0 %464
        %466 = vrot.lane.b32.xlu0 %v225, 1
        %v467 = vpop.permute.xlu0 %466
        %468 = vrot.lane.b32.xlu0 %v226, 1
        %v469 = vpop.permute.xlu0 %468
        %470 = vrot.lane.b32.xlu0 %v227, 1
        %v471 = vpop.permute.xlu0 %470
        %472 = vrot.lane.b32.xlu0 %v228, 1
        %v473 = vpop.permute.xlu0 %472
        %474 = vrot.lane.b32.xlu0 %v229, 1
        %v475 = vpop.permute.xlu0 %474
        %476 = vrot.lane.b32.xlu0 %v230, 1
        %v477 = vpop.permute.xlu0 %476
        %478 = vrot.lane.b32.xlu0 %v231, 1
        %v479 = vpop.permute.xlu0 %478
        %480 = vrot.lane.b32.xlu0 %v232, 1
        %v481 = vpop.permute.xlu0 %480
        %482 = vrot.lane.b32.xlu0 %v233, 1
        %v483 = vpop.permute.xlu0 %482
        %484 = vrot.lane.b32.xlu0 %v234, 1
        %v485 = vpop.permute.xlu0 %484
        %486 = vrot.lane.b32.xlu0 %v235, 1
        %v487 = vpop.permute.xlu0 %486
        %488 = vrot.lane.b32.xlu0 %v236, 1
        %v489 = vpop.permute.xlu0 %488
        %490 = vrot.lane.b32.xlu0 %v237, 1
        %v491 = vpop.permute.xlu0 %490
        %492 = vrot.lane.b32.xlu0 %v238, 1
        %v493 = vpop.permute.xlu0 %492
        %494 = vrot.lane.b32.xlu0 %v239, 1
        %v495 = vpop.permute.xlu0 %494
        %s496 = sld [smem:[#allocation2]]
        %s497 = sld [smem:[#allocation2 + $0x1]]
        %s498 = sld [smem:[#allocation2 + $0x80]]
        %s499 = sld [smem:[#allocation2 + $0x81]]
        %v500 = vstv %s496
        %v501 = vmul.f32 %v500, %v176
        %v502 = vmul.f32 %v500, %v177
        %v503 = vmul.f32 %v500, %v178
        %v504 = vmul.f32 %v500, %v179
        %v505 = vmul.f32 %v500, %v180
        %v506 = vmul.f32 %v500, %v181
        %v507 = vmul.f32 %v500, %v182
        %v508 = vmul.f32 %v500, %v183
        %v509 = vmul.f32 %v500, %v184
        %v510 = vmul.f32 %v500, %v185
        %v511 = vmul.f32 %v500, %v186
        %v512 = vmul.f32 %v500, %v187
        %v513 = vmul.f32 %v500, %v188
        %v514 = vmul.f32 %v500, %v189
        %v515 = vmul.f32 %v500, %v190
        %v516 = vmul.f32 %v500, %v191
        %v517 = vmul.f32 %v500, %v192
        %v518 = vmul.f32 %v500, %v193
        %v519 = vmul.f32 %v500, %v194
        %v520 = vmul.f32 %v500, %v195
        %v521 = vmul.f32 %v500, %v196
        %v522 = vmul.f32 %v500, %v197
        %v523 = vmul.f32 %v500, %v198
        %v524 = vmul.f32 %v500, %v199
        %v525 = vmul.f32 %v500, %v200
        %v526 = vmul.f32 %v500, %v201
        %v527 = vmul.f32 %v500, %v202
        %v528 = vmul.f32 %v500, %v203
        %v529 = vmul.f32 %v500, %v204
        %v530 = vmul.f32 %v500, %v205
        %v531 = vmul.f32 %v500, %v206
        %v532 = vmul.f32 %v500, %v207
        %v533 = vmul.f32 %v500, %v208
        %v534 = vmul.f32 %v500, %v209
        %v535 = vmul.f32 %v500, %v210
        %v536 = vmul.f32 %v500, %v211
        %v537 = vmul.f32 %v500, %v212
        %v538 = vmul.f32 %v500, %v213
        %v539 = vmul.f32 %v500, %v214
        %v540 = vmul.f32 %v500, %v215
        %v541 = vmul.f32 %v500, %v216
        %v542 = vmul.f32 %v500, %v217
        %v543 = vmul.f32 %v500, %v218
        %v544 = vmul.f32 %v500, %v219
        %v545 = vmul.f32 %v500, %v220
        %v546 = vmul.f32 %v500, %v221
        %v547 = vmul.f32 %v500, %v222
        %v548 = vmul.f32 %v500, %v223
        %v549 = vmul.f32 %v500, %v224
        %v550 = vmul.f32 %v500, %v225
        %v551 = vmul.f32 %v500, %v226
        %v552 = vmul.f32 %v500, %v227
        %v553 = vmul.f32 %v500, %v228
        %v554 = vmul.f32 %v500, %v229
        %v555 = vmul.f32 %v500, %v230
        %v556 = vmul.f32 %v500, %v231
        %v557 = vmul.f32 %v500, %v232
        %v558 = vmul.f32 %v500, %v233
        %v559 = vmul.f32 %v500, %v234
        %v560 = vmul.f32 %v500, %v235
        %v561 = vmul.f32 %v500, %v236
        %v562 = vmul.f32 %v500, %v237
        %v563 = vmul.f32 %v500, %v238
        %v564 = vmul.f32 %v500, %v239
        %v565 = vstv %s498
        %v566 = vmul.f32 %v565, %v241
        %v567 = vmul.f32 %v565, %v243
        %v568 = vmul.f32 %v565, %v245
        %v569 = vmul.f32 %v565, %v247
        %v570 = vmul.f32 %v565, %v249
        %v571 = vmul.f32 %v565, %v251
        %v572 = vmul.f32 %v565, %v253
        %v573 = vmul.f32 %v565, %v255
        %v574 = vmul.f32 %v565, %v257
        %v575 = vmul.f32 %v565, %v259
        %v576 = vmul.f32 %v565, %v261
        %v577 = vmul.f32 %v565, %v263
        %v578 = vmul.f32 %v565, %v265
        %v579 = vmul.f32 %v565, %v267
        %v580 = vmul.f32 %v565, %v269
        %v581 = vmul.f32 %v565, %v271
        %v582 = vmul.f32 %v565, %v273
        %v583 = vmul.f32 %v565, %v275
        %v584 = vmul.f32 %v565, %v277
        %v585 = vmul.f32 %v565, %v279
        %v586 = vmul.f32 %v565, %v281
        %v587 = vmul.f32 %v565, %v283
        %v588 = vmul.f32 %v565, %v285
        %v589 = vmul.f32 %v565, %v287
        %v590 = vmul.f32 %v565, %v289
        %v591 = vmul.f32 %v565, %v291
        %v592 = vmul.f32 %v565, %v293
        %v593 = vmul.f32 %v565, %v295
        %v594 = vmul.f32 %v565, %v297
        %v595 = vmul.f32 %v565, %v299
        %v596 = vmul.f32 %v565, %v301
        %v597 = vmul.f32 %v565, %v303
        %v598 = vmul.f32 %v565, %v305
        %v599 = vmul.f32 %v565, %v307
        %v600 = vmul.f32 %v565, %v309
        %v601 = vmul.f32 %v565, %v311
        %v602 = vmul.f32 %v565, %v313
        %v603 = vmul.f32 %v565, %v315
        %v604 = vmul.f32 %v565, %v317
        %v605 = vmul.f32 %v565, %v319
        %v606 = vmul.f32 %v565, %v321
        %v607 = vmul.f32 %v565, %v323
        %v608 = vmul.f32 %v565, %v325
        %v609 = vmul.f32 %v565, %v327
        %v610 = vmul.f32 %v565, %v329
        %v611 = vmul.f32 %v565, %v331
        %v612 = vmul.f32 %v565, %v333
        %v613 = vmul.f32 %v565, %v335
        %v614 = vmul.f32 %v565, %v337
        %v615 = vmul.f32 %v565, %v339
        %v616 = vmul.f32 %v565, %v341
        %v617 = vmul.f32 %v565, %v343
        %v618 = vmul.f32 %v565, %v345
        %v619 = vmul.f32 %v565, %v347
        %v620 = vmul.f32 %v565, %v349
        %v621 = vmul.f32 %v565, %v351
        %v622 = vmul.f32 %v565, %v353
        %v623 = vmul.f32 %v565, %v355
        %v624 = vmul.f32 %v565, %v357
        %v625 = vmul.f32 %v565, %v359
        %v626 = vmul.f32 %v565, %v361
        %v627 = vmul.f32 %v565, %v363
        %v628 = vmul.f32 %v565, %v365
        %v629 = vmul.f32 %v565, %v367
        %v630 = vadd.f32 %v501, %v566
        %v631 = vadd.f32 %v502, %v567
        %v632 = vadd.f32 %v503, %v568
        %v633 = vadd.f32 %v504, %v569
        %v634 = vadd.f32 %v505, %v570
        %v635 = vadd.f32 %v506, %v571
        %v636 = vadd.f32 %v507, %v572
        %v637 = vadd.f32 %v508, %v573
        %v638 = vadd.f32 %v509, %v574
        %v639 = vadd.f32 %v510, %v575
        %v640 = vadd.f32 %v511, %v576
        %v641 = vadd.f32 %v512, %v577
        %v642 = vadd.f32 %v513, %v578
        %v643 = vadd.f32 %v514, %v579
        %v644 = vadd.f32 %v515, %v580
        %v645 = vadd.f32 %v516, %v581
        %v646 = vadd.f32 %v517, %v582
        %v647 = vadd.f32 %v518, %v583
        %v648 = vadd.f32 %v519, %v584
        %v649 = vadd.f32 %v520, %v585
        %v650 = vadd.f32 %v521, %v586
        %v651 = vadd.f32 %v522, %v587
        %v652 = vadd.f32 %v523, %v588
        %v653 = vadd.f32 %v524, %v589
        %v654 = vadd.f32 %v525, %v590
        %v655 = vadd.f32 %v526, %v591
        %v656 = vadd.f32 %v527, %v592
        %v657 = vadd.f32 %v528, %v593
        %v658 = vadd.f32 %v529, %v594
        %v659 = vadd.f32 %v530, %v595
        %v660 = vadd.f32 %v531, %v596
        %v661 = vadd.f32 %v532, %v597
        %v662 = vadd.f32 %v533, %v598
        %v663 = vadd.f32 %v534, %v599
        %v664 = vadd.f32 %v535, %v600
        %v665 = vadd.f32 %v536, %v601
        %v666 = vadd.f32 %v537, %v602
        %v667 = vadd.f32 %v538, %v603
        %v668 = vadd.f32 %v539, %v604
        %v669 = vadd.f32 %v540, %v605
        %v670 = vadd.f32 %v541, %v606
        %v671 = vadd.f32 %v542, %v607
        %v672 = vadd.f32 %v543, %v608
        %v673 = vadd.f32 %v544, %v609
        %v674 = vadd.f32 %v545, %v610
        %v675 = vadd.f32 %v546, %v611
        %v676 = vadd.f32 %v547, %v612
        %v677 = vadd.f32 %v548, %v613
        %v678 = vadd.f32 %v549, %v614
        %v679 = vadd.f32 %v550, %v615
        %v680 = vadd.f32 %v551, %v616
        %v681 = vadd.f32 %v552, %v617
        %v682 = vadd.f32 %v553, %v618
        %v683 = vadd.f32 %v554, %v619
        %v684 = vadd.f32 %v555, %v620
        %v685 = vadd.f32 %v556, %v621
        %v686 = vadd.f32 %v557, %v622
        %v687 = vadd.f32 %v558, %v623
        %v688 = vadd.f32 %v559, %v624
        %v689 = vadd.f32 %v560, %v625
        %v690 = vadd.f32 %v561, %v626
        %v691 = vadd.f32 %v562, %v627
        %v692 = vadd.f32 %v563, %v628
        %v693 = vadd.f32 %v564, %v629
        %v694 = vstv %s497
        %v695 = vmul.f32 %v694, %v369
        %v696 = vmul.f32 %v694, %v371
        %v697 = vmul.f32 %v694, %v373
        %v698 = vmul.f32 %v694, %v375
        %v699 = vmul.f32 %v694, %v377
        %v700 = vmul.f32 %v694, %v379
        %v701 = vmul.f32 %v694, %v381
        %v702 = vmul.f32 %v694, %v383
        %v703 = vmul.f32 %v694, %v385
        %v704 = vmul.f32 %v694, %v387
        %v705 = vmul.f32 %v694, %v389
        %v706 = vmul.f32 %v694, %v391
        %v707 = vmul.f32 %v694, %v393
        %v708 = vmul.f32 %v694, %v395
        %v709 = vmul.f32 %v694, %v397
        %v710 = vmul.f32 %v694, %v399
        %v711 = vmul.f32 %v694, %v401
        %v712 = vmul.f32 %v694, %v403
        %v713 = vmul.f32 %v694, %v405
        %v714 = vmul.f32 %v694, %v407
        %v715 = vmul.f32 %v694, %v409
        %v716 = vmul.f32 %v694, %v411
        %v717 = vmul.f32 %v694, %v413
        %v718 = vmul.f32 %v694, %v415
        %v719 = vmul.f32 %v694, %v417
        %v720 = vmul.f32 %v694, %v419
        %v721 = vmul.f32 %v694, %v421
        %v722 = vmul.f32 %v694, %v423
        %v723 = vmul.f32 %v694, %v425
        %v724 = vmul.f32 %v694, %v427
        %v725 = vmul.f32 %v694, %v429
        %v726 = vmul.f32 %v694, %v431
        %v727 = vmul.f32 %v694, %v433
        %v728 = vmul.f32 %v694, %v435
        %v729 = vmul.f32 %v694, %v437
        %v730 = vmul.f32 %v694, %v439
        %v731 = vmul.f32 %v694, %v441
        %v732 = vmul.f32 %v694, %v443
        %v733 = vmul.f32 %v694, %v445
        %v734 = vmul.f32 %v694, %v447
        %v735 = vmul.f32 %v694, %v449
        %v736 = vmul.f32 %v694, %v451
        %v737 = vmul.f32 %v694, %v453
        %v738 = vmul.f32 %v694, %v455
        %v739 = vmul.f32 %v694, %v457
        %v740 = vmul.f32 %v694, %v459
        %v741 = vmul.f32 %v694, %v461
        %v742 = vmul.f32 %v694, %v463
        %v743 = vmul.f32 %v694, %v465
        %v744 = vmul.f32 %v694, %v467
        %v745 = vmul.f32 %v694, %v469
        %v746 = vmul.f32 %v694, %v471
        %v747 = vmul.f32 %v694, %v473
        %v748 = vmul.f32 %v694, %v475
        %v749 = vmul.f32 %v694, %v477
        %v750 = vmul.f32 %v694, %v479
        %v751 = vmul.f32 %v694, %v481
        %v752 = vmul.f32 %v694, %v483
        %v753 = vmul.f32 %v694, %v485
        %v754 = vmul.f32 %v694, %v487
        %v755 = vmul.f32 %v694, %v489
        %v756 = vmul.f32 %v694, %v491
        %v757 = vmul.f32 %v694, %v493
        %v758 = vmul.f32 %v694, %v495
        %v759 = vstv %s499
        %v760 = vmul.f32 %v759, %v176
        %v761 = vmul.f32 %v759, %v177
        %v762 = vmul.f32 %v759, %v178
        %v763 = vmul.f32 %v759, %v179
        %v764 = vmul.f32 %v759, %v180
        %v765 = vmul.f32 %v759, %v181
        %v766 = vmul.f32 %v759, %v182
        %v767 = vmul.f32 %v759, %v183
        %v768 = vmul.f32 %v759, %v184
        %v769 = vmul.f32 %v759, %v185
        %v770 = vmul.f32 %v759, %v186
        %v771 = vmul.f32 %v759, %v187
        %v772 = vmul.f32 %v759, %v188
        %v773 = vmul.f32 %v759, %v189
        %v774 = vmul.f32 %v759, %v190
        %v775 = vmul.f32 %v759, %v191
        %v776 = vmul.f32 %v759, %v192
        %v777 = vmul.f32 %v759, %v193
        %v778 = vmul.f32 %v759, %v194
        %v779 = vmul.f32 %v759, %v195
        %v780 = vmul.f32 %v759, %v196
        %v781 = vmul.f32 %v759, %v197
        %v782 = vmul.f32 %v759, %v198
        %v783 = vmul.f32 %v759, %v199
        %v784 = vmul.f32 %v759, %v200
        %v785 = vmul.f32 %v759, %v201
        %v786 = vmul.f32 %v759, %v202
        %v787 = vmul.f32 %v759, %v203
        %v788 = vmul.f32 %v759, %v204
        %v789 = vmul.f32 %v759, %v205
        %v790 = vmul.f32 %v759, %v206
        %v791 = vmul.f32 %v759, %v207
        %v792 = vmul.f32 %v759, %v208
        %v793 = vmul.f32 %v759, %v209
        %v794 = vmul.f32 %v759, %v210
        %v795 = vmul.f32 %v759, %v211
        %v796 = vmul.f32 %v759, %v212
        %v797 = vmul.f32 %v759, %v213
        %v798 = vmul.f32 %v759, %v214
        %v799 = vmul.f32 %v759, %v215
        %v800 = vmul.f32 %v759, %v216
        %v801 = vmul.f32 %v759, %v217
        %v802 = vmul.f32 %v759, %v218
        %v803 = vmul.f32 %v759, %v219
        %v804 = vmul.f32 %v759, %v220
        %v805 = vmul.f32 %v759, %v221
        %v806 = vmul.f32 %v759, %v222
        %v807 = vmul.f32 %v759, %v223
        %v808 = vmul.f32 %v759, %v224
        %v809 = vmul.f32 %v759, %v225
        %v810 = vmul.f32 %v759, %v226
        %v811 = vmul.f32 %v759, %v227
        %v812 = vmul.f32 %v759, %v228
        %v813 = vmul.f32 %v759, %v229
        %v814 = vmul.f32 %v759, %v230
        %v815 = vmul.f32 %v759, %v231
        %v816 = vmul.f32 %v759, %v232
        %v817 = vmul.f32 %v759, %v233
        %v818 = vmul.f32 %v759, %v234
        %v819 = vmul.f32 %v759, %v235
        %v820 = vmul.f32 %v759, %v236
        %v821 = vmul.f32 %v759, %v237
        %v822 = vmul.f32 %v759, %v238
        %v823 = vmul.f32 %v759, %v239
        %v824 = vadd.f32 %v695, %v760
        %v825 = vadd.f32 %v696, %v761
        %v826 = vadd.f32 %v697, %v762
        %v827 = vadd.f32 %v698, %v763
        %v828 = vadd.f32 %v699, %v764
        %v829 = vadd.f32 %v700, %v765
        %v830 = vadd.f32 %v701, %v766
        %v831 = vadd.f32 %v702, %v767
        %v832 = vadd.f32 %v703, %v768
        %v833 = vadd.f32 %v704, %v769
        %v834 = vadd.f32 %v705, %v770
        %v835 = vadd.f32 %v706, %v771
        %v836 = vadd.f32 %v707, %v772
        %v837 = vadd.f32 %v708, %v773
        %v838 = vadd.f32 %v709, %v774
        %v839 = vadd.f32 %v710, %v775
        %v840 = vadd.f32 %v711, %v776
        %v841 = vadd.f32 %v712, %v777
        %v842 = vadd.f32 %v713, %v778
        %v843 = vadd.f32 %v714, %v779
        %v844 = vadd.f32 %v715, %v780
        %v845 = vadd.f32 %v716, %v781
        %v846 = vadd.f32 %v717, %v782
        %v847 = vadd.f32 %v718, %v783
        %v848 = vadd.f32 %v719, %v784
        %v849 = vadd.f32 %v720, %v785
        %v850 = vadd.f32 %v721, %v786
        %v851 = vadd.f32 %v722, %v787
        %v852 = vadd.f32 %v723, %v788
        %v853 = vadd.f32 %v724, %v789
        %v854 = vadd.f32 %v725, %v790
        %v855 = vadd.f32 %v726, %v791
        %v856 = vadd.f32 %v727, %v792
        %v857 = vadd.f32 %v728, %v793
        %v858 = vadd.f32 %v729, %v794
        %v859 = vadd.f32 %v730, %v795
        %v860 = vadd.f32 %v731, %v796
        %v861 = vadd.f32 %v732, %v797
        %v862 = vadd.f32 %v733, %v798
        %v863 = vadd.f32 %v734, %v799
        %v864 = vadd.f32 %v735, %v800
        %v865 = vadd.f32 %v736, %v801
        %v866 = vadd.f32 %v737, %v802
        %v867 = vadd.f32 %v738, %v803
        %v868 = vadd.f32 %v739, %v804
        %v869 = vadd.f32 %v740, %v805
        %v870 = vadd.f32 %v741, %v806
        %v871 = vadd.f32 %v742, %v807
        %v872 = vadd.f32 %v743, %v808
        %v873 = vadd.f32 %v744, %v809
        %v874 = vadd.f32 %v745, %v810
        %v875 = vadd.f32 %v746, %v811
        %v876 = vadd.f32 %v747, %v812
        %v877 = vadd.f32 %v748, %v813
        %v878 = vadd.f32 %v749, %v814
        %v879 = vadd.f32 %v750, %v815
        %v880 = vadd.f32 %v751, %v816
        %v881 = vadd.f32 %v752, %v817
        %v882 = vadd.f32 %v753, %v818
        %v883 = vadd.f32 %v754, %v819
        %v884 = vadd.f32 %v755, %v820
        %v885 = vadd.f32 %v756, %v821
        %v886 = vadd.f32 %v757, %v822
        %v887 = vadd.f32 %v758, %v823
        %v888 = vlaneseq
        %v889 = vand.u32 %v888, 127
        %v890 = vand.u32 %v889, 1
        %vm891 = vcmp.eq.s32.totalorder %v890, 0
        %v892 = vsel %vm891, %v630, %v824
        %v893 = vsel %vm891, %v631, %v825
        %v894 = vsel %vm891, %v632, %v826
        %v895 = vsel %vm891, %v633, %v827
        %v896 = vsel %vm891, %v634, %v828
        %v897 = vsel %vm891, %v635, %v829
        %v898 = vsel %vm891, %v636, %v830
        %v899 = vsel %vm891, %v637, %v831
        %v900 = vsel %vm891, %v638, %v832
        %v901 = vsel %vm891, %v639, %v833
        %v902 = vsel %vm891, %v640, %v834
        %v903 = vsel %vm891, %v641, %v835
        %v904 = vsel %vm891, %v642, %v836
        %v905 = vsel %vm891, %v643, %v837
        %v906 = vsel %vm891, %v644, %v838
        %v907 = vsel %vm891, %v645, %v839
        %v908 = vsel %vm891, %v646, %v840
        %v909 = vsel %vm891, %v647, %v841
        %v910 = vsel %vm891, %v648, %v842
        %v911 = vsel %vm891, %v649, %v843
        %v912 = vsel %vm891, %v650, %v844
        %v913 = vsel %vm891, %v651, %v845
        %v914 = vsel %vm891, %v652, %v846
        %v915 = vsel %vm891, %v653, %v847
        %v916 = vsel %vm891, %v654, %v848
        %v917 = vsel %vm891, %v655, %v849
        %v918 = vsel %vm891, %v656, %v850
        %v919 = vsel %vm891, %v657, %v851
        %v920 = vsel %vm891, %v658, %v852
        %v921 = vsel %vm891, %v659, %v853
        %v922 = vsel %vm891, %v660, %v854
        %v923 = vsel %vm891, %v661, %v855
        %v924 = vsel %vm891, %v662, %v856
        %v925 = vsel %vm891, %v663, %v857
        %v926 = vsel %vm891, %v664, %v858
        %v927 = vsel %vm891, %v665, %v859
        %v928 = vsel %vm891, %v666, %v860
        %v929 = vsel %vm891, %v667, %v861
        %v930 = vsel %vm891, %v668, %v862
        %v931 = vsel %vm891, %v669, %v863
        %v932 = vsel %vm891, %v670, %v864
        %v933 = vsel %vm891, %v671, %v865
        %v934 = vsel %vm891, %v672, %v866
        %v935 = vsel %vm891, %v673, %v867
        %v936 = vsel %vm891, %v674, %v868
        %v937 = vsel %vm891, %v675, %v869
        %v938 = vsel %vm891, %v676, %v870
        %v939 = vsel %vm891, %v677, %v871
        %v940 = vsel %vm891, %v678, %v872
        %v941 = vsel %vm891, %v679, %v873
        %v942 = vsel %vm891, %v680, %v874
        %v943 = vsel %vm891, %v681, %v875
        %v944 = vsel %vm891, %v682, %v876
        %v945 = vsel %vm891, %v683, %v877
        %v946 = vsel %vm891, %v684, %v878
        %v947 = vsel %vm891, %v685, %v879
        %v948 = vsel %vm891, %v686, %v880
        %v949 = vsel %vm891, %v687, %v881
        %v950 = vsel %vm891, %v688, %v882
        %v951 = vsel %vm891, %v689, %v883
        %v952 = vsel %vm891, %v690, %v884
        %v953 = vsel %vm891, %v691, %v885
        %v954 = vsel %vm891, %v692, %v886
        %v955 = vsel %vm891, %v693, %v887
        %956 = vst [vmem:[%s173] sm:$0xff] %v892
        %957 = vst [vmem:[%s173 + $0x8] sm:$0xff] %v893
        %958 = vst [vmem:[%s173 + $0x10] sm:$0xff] %v894
        %959 = vst [vmem:[%s173 + $0x18] sm:$0xff] %v895
        %960 = vst [vmem:[%s173 + $0x20] sm:$0xff] %v896
        %961 = vst [vmem:[%s173 + $0x28] sm:$0xff] %v897
        %962 = vst [vmem:[%s173 + $0x30] sm:$0xff] %v898
        %963 = vst [vmem:[%s173 + $0x38] sm:$0xff] %v899
        %964 = vst [vmem:[%s173 + $0x40] sm:$0xff] %v900
        %965 = vst [vmem:[%s173 + $0x48] sm:$0xff] %v901
        %966 = vst [vmem:[%s173 + $0x50] sm:$0xff] %v902
        %967 = vst [vmem:[%s173 + $0x58] sm:$0xff] %v903
        %968 = vst [vmem:[%s173 + $0x60] sm:$0xff] %v904
        %969 = vst [vmem:[%s173 + $0x68] sm:$0xff] %v905
        %970 = vst [vmem:[%s173 + $0x70] sm:$0xff] %v906
        %971 = vst [vmem:[%s173 + $0x78] sm:$0xff] %v907
        %972 = vst [vmem:[%s173 + $0x80] sm:$0xff] %v908
        %973 = vst [vmem:[%s173 + $0x88] sm:$0xff] %v909
        %974 = vst [vmem:[%s173 + $0x90] sm:$0xff] %v910
        %975 = vst [vmem:[%s173 + $0x98] sm:$0xff] %v911
        %976 = vst [vmem:[%s173 + $0xa0] sm:$0xff] %v912
        %977 = vst [vmem:[%s173 + $0xa8] sm:$0xff] %v913
        %978 = vst [vmem:[%s173 + $0xb0] sm:$0xff] %v914
        %979 = vst [vmem:[%s173 + $0xb8] sm:$0xff] %v915
        %980 = vst [vmem:[%s173 + $0xc0] sm:$0xff] %v916
        %981 = vst [vmem:[%s173 + $0xc8] sm:$0xff] %v917
        %982 = vst [vmem:[%s173 + $0xd0] sm:$0xff] %v918
        %983 = vst [vmem:[%s173 + $0xd8] sm:$0xff] %v919
        %984 = vst [vmem:[%s173 + $0xe0] sm:$0xff] %v920
        %985 = vst [vmem:[%s173 + $0xe8] sm:$0xff] %v921
        %986 = vst [vmem:[%s173 + $0xf0] sm:$0xff] %v922
        %987 = vst [vmem:[%s173 + $0xf8] sm:$0xff] %v923
        %988 = vst [vmem:[%s173 + $0x100] sm:$0xff] %v924
        %989 = vst [vmem:[%s173 + $0x108] sm:$0xff] %v925
        %990 = vst [vmem:[%s173 + $0x110] sm:$0xff] %v926
        %991 = vst [vmem:[%s173 + $0x118] sm:$0xff] %v927
        %992 = vst [vmem:[%s173 + $0x120] sm:$0xff] %v928
        %993 = vst [vmem:[%s173 + $0x128] sm:$0xff] %v929
        %994 = vst [vmem:[%s173 + $0x130] sm:$0xff] %v930
        %995 = vst [vmem:[%s173 + $0x138] sm:$0xff] %v931
        %996 = vst [vmem:[%s173 + $0x140] sm:$0xff] %v932
        %997 = vst [vmem:[%s173 + $0x148] sm:$0xff] %v933
        %998 = vst [vmem:[%s173 + $0x150] sm:$0xff] %v934
        %999 = vst [vmem:[%s173 + $0x158] sm:$0xff] %v935
        %1000 = vst [vmem:[%s173 + $0x160] sm:$0xff] %v936
        %1001 = vst [vmem:[%s173 + $0x168] sm:$0xff] %v937
        %1002 = vst [vmem:[%s173 + $0x170] sm:$0xff] %v938
        %1003 = vst [vmem:[%s173 + $0x178] sm:$0xff] %v939
        %1004 = vst [vmem:[%s173 + $0x180] sm:$0xff] %v940
        %1005 = vst [vmem:[%s173 + $0x188] sm:$0xff] %v941
        %1006 = vst [vmem:[%s173 + $0x190] sm:$0xff] %v942
        %1007 = vst [vmem:[%s173 + $0x198] sm:$0xff] %v943
        %1008 = vst [vmem:[%s173 + $0x1a0] sm:$0xff] %v944
        %1009 = vst [vmem:[%s173 + $0x1a8] sm:$0xff] %v945
        %1010 = vst [vmem:[%s173 + $0x1b0] sm:$0xff] %v946
        %1011 = vst [vmem:[%s173 + $0x1b8] sm:$0xff] %v947
        %1012 = vst [vmem:[%s173 + $0x1c0] sm:$0xff] %v948
        %1013 = vst [vmem:[%s173 + $0x1c8] sm:$0xff] %v949
        %1014 = vst [vmem:[%s173 + $0x1d0] sm:$0xff] %v950
        %1015 = vst [vmem:[%s173 + $0x1d8] sm:$0xff] %v951
        %1016 = vst [vmem:[%s173 + $0x1e0] sm:$0xff] %v952
        %1017 = vst [vmem:[%s173 + $0x1e8] sm:$0xff] %v953
        %1018 = vst [vmem:[%s173 + $0x1f0] sm:$0xff] %v954
        %1019 = vst [vmem:[%s173 + $0x1f8] sm:$0xff] %v955
        %s1020 = sand.u32 %s75, 1
        %s1021 = scalar_lea.sflag [#allocation4], %s1020
        %s1022 = sand.u32 %s75, 1
        %s1023 = smul.addr %s1022, 512
        %s1024 = scalar_lea.vmem [#allocation7], %s1023
        // Predicated region
        $region37: #{tpu_custom_call.1} parent=27 // pred_check
          %p1025 = pneg %p85
        $region38: #{tpu_custom_call.1} parent=27 // pred_check_branch
          %1027 = sbr.rel (%p1025) target = $region40
        $region39: #{tpu_custom_call.1} parent=27 // pred_region
          %s1028 = smul.u32 64, %s20
          %s1030 = ssub.s32 8192, 8192
          %1031 = vsyncadd %s1021, %s1030
          %s1032 = smul.addr %s1028, 128
          %s1033 = scalar_lea.hbm %s2, %s1032
          %s1034 = sshll.u32 %s1024, 4
          %s1035 = int_to_ptr.vmem [resolvable:$true] %s1034
          %1040 = dma.vmem_to_hbm [thread:$0]  %s1035, 8192, %s1033, %s1021, 128, 128, 8
        $region40: #{tpu_custom_call.1} parent=27 // pred_fallthru
          _
      $region28: #{tpu_custom_call.1} parent=5 // pred_fallthru
        _
      %p1041 = scmp.le.s32.totalorder 2, %s15
      // Predicated region
      $region41: #{tpu_custom_call.1} parent=5 // pred_check
        %p1042 = pneg %p1041
      $region42: #{tpu_custom_call.1} parent=5 // pred_check_branch
        %1044 = sbr.rel (%p1042) target = $region44
      $region43: #{tpu_custom_call.1} parent=5 // pred_region
        %s1045 = ssub.s32 %s15, 2
        // Predicated region
        $region45: #{tpu_custom_call.1} parent=43 // pred_check
          %p1046 = pneg %p91
        $region46: #{tpu_custom_call.1} parent=43 // pred_check_branch
          %1048 = sbr.rel (%p1046) target = $region48
        $region47: #{tpu_custom_call.1} parent=43 // pred_region
          %s1049 = sand.u32 %s76, 1
          %s1050 = scalar_lea.sflag [#allocation4], %s1049
          %s1051 = sand.u32 %s76, 1
          %s1052 = smul.addr %s1051, 512
          %s1053 = scalar_lea.vmem [#allocation7], %s1052
          %1054 = dma.done %s1050, 8192
        $region48: #{tpu_custom_call.1} parent=43 // pred_fallthru
          _
      $region44: #{tpu_custom_call.1} parent=5 // pred_fallthru
        _
    $region6: #{tpu_custom_call.1} parent=1 // loop_footer
      %s19 = sadd.s32 1, %s15
    $region7: #{tpu_custom_call.1} parent=1 // loop_footer_branch
      %14 = sbr.rel target = $region3
    $region8: #{tpu_custom_call.1} parent=1 // loop_exit
      _
    %1055 = vsyncpa [#allocation3], 1
    %s1056 = scalar_lea.sflag [#allocation3], 1
    %1057 = vsyncpa %s1056, 1
    %1058 = vsyncpa [#allocation4], 1
    %s1059 = scalar_lea.sflag [#allocation4], 1
    %1060 = vsyncpa %s1059, 1
    %1061 = vsyncpa [#allocation5], 1
    %s1062 = scalar_lea.sflag [#allocation5], 1
    %1063 = vsyncpa %s1062, 1

</llo_original>
